<compile_context>
chip_gen: v6e
topology: v6e:2x2x1
jax: 0.10.0
libtpu: 0.0.40
codegen_flags: <defaults>
</compile_context>

<pallas_src>
import jax
import jax.numpy as jnp
import numpy as np
from jax.experimental import pallas as pl
from jax.experimental.pallas import tpu as pltpu

INPUT_DIM = 8
HIDDEN_DIM = 128
OUTPUT_DIM = 512


def zmap_kernel(x_ref, w1_ref, w2_ref, o_ref):
    # x_ref:  (TILE_B, INPUT_DIM)      f32 (per-grid-step tile)
    # w1_ref: (INPUT_DIM, HIDDEN_DIM)  f32  (resident, same block every step)
    # w2_ref: (HIDDEN_DIM, OUTPUT_DIM) bf16 (resident, same block every step)
    # o_ref:  (TILE_B, OUTPUT_DIM)     f32 (or bf16 if requested)

    # LinearBlock 1: fc (no bias) + LeakyReLU(0.2). Tiny K=8 layer kept in f32
    # (only ~1.5% of FLOPs and the kernel is HBM-bound, so it is free).
    h = jnp.dot(x_ref[...], w1_ref[...], preferred_element_type=jnp.float32)
    h = jnp.maximum(h, 0.2 * h)  # LeakyReLU(0.2) as a single VPU max

    # LinearBlock 2: fc (no bias) + Tanh; bf16 operands, f32 accumulate, f32 tanh.
    y = jnp.dot(h.astype(jnp.bfloat16), w2_ref[...],
                preferred_element_type=jnp.float32)
    o_ref[...] = jnp.tanh(y).astype(o_ref.dtype)


def _vmem_capacity_bytes():
    try:
        return int(pltpu.get_tpu_info().vmem_capacity_bytes)
    except Exception:
        return 128 << 20  # v5e/v6e default assumption


def _select_tile_b(B, requested, max_tile_b):
    tile = max_tile_b if requested is None else min(int(requested), max_tile_b)
    tile = max(8, (tile // 8) * 8)  # satisfy the (8, 128) block constraint
    if tile >= B:
        # Mid-size batches: split into ~4 tiles (>=256 rows each) so writeback
        # of tile i-1 overlaps compute of tile i. Tiny batches: one full tile.
        t = max(256, 8 * pl.cdiv(pl.cdiv(B, 4), 8))
        tile = t if t < B else B
    return tile


def _make_zmap_call(B, tile_b, x_dtype, w1_dtype, w2_dtype, out_dtype,
                    semantics, single_buffer_weights, vmem_limit_bytes):
    grid = (pl.cdiv(B, tile_b),)

    wspec_kwargs = {}
    if single_buffer_weights:
        # Constant index_map -> a second buffer is pure VMEM waste.
        wspec_kwargs["pipeline_mode"] = pl.Buffered(1)

    in_specs = [
        # batch-tiled activations (double-buffered by Pallas)
        pl.BlockSpec((tile_b, INPUT_DIM), lambda i: (i, 0)),
        # weights: full-shape blocks, same index every step -> resident in VMEM
        pl.BlockSpec((INPUT_DIM, HIDDEN_DIM), lambda i: (0, 0), **wspec_kwargs),
        pl.BlockSpec((HIDDEN_DIM, OUTPUT_DIM), lambda i: (0, 0), **wspec_kwargs),
    ]
    out_specs = pl.BlockSpec((tile_b, OUTPUT_DIM), lambda i: (i, 0))

    cost = pl.CostEstimate(
        flops=2 * B * (INPUT_DIM * HIDDEN_DIM + HIDDEN_DIM * OUTPUT_DIM),
        transcendentals=B * OUTPUT_DIM,
        bytes_accessed=(B * INPUT_DIM * jnp.dtype(x_dtype).itemsize
                        + B * OUTPUT_DIM * jnp.dtype(out_dtype).itemsize
                        + INPUT_DIM * HIDDEN_DIM * jnp.dtype(w1_dtype).itemsize
                        + HIDDEN_DIM * OUTPUT_DIM * jnp.dtype(w2_dtype).itemsize),
    )

    return pl.pallas_call(
        zmap_kernel,
        out_shape=jax.ShapeDtypeStruct((B, OUTPUT_DIM), out_dtype),
        grid=grid,
        in_specs=in_specs,
        out_specs=out_specs,
        compiler_params=pltpu.CompilerParams(
            dimension_semantics=semantics,
            vmem_limit_bytes=vmem_limit_bytes,
        ),
        cost_estimate=cost,
    )


def zmap_forward(x, w1, w2, *, tile_b=None, out_dtype=jnp.float32):
    """x: (B, INPUT_DIM) f32; w1: (INPUT_DIM, HIDDEN_DIM); w2: (HIDDEN_DIM, OUTPUT_DIM).

    w1 is used in f32 (tiny first layer, free accuracy); w2 in bf16 (dominant
    layer, bf16 MXU rate + half the weight DMA). Output defaults to f32 to
    match the PyTorch module.
    """
    B = x.shape[0]
    assert x.shape[1] == INPUT_DIM
    assert w1.shape == (INPUT_DIM, HIDDEN_DIM)
    assert w2.shape == (HIDDEN_DIM, OUTPUT_DIM)

    if w1.dtype != jnp.float32:
        w1 = w1.astype(jnp.float32)
    if w2.dtype != jnp.bfloat16:
        w2 = w2.astype(jnp.bfloat16)  # init_params already stores bf16 -> no-op

    vmem_cap = _vmem_capacity_bytes()
    small_vmem = vmem_cap <= (64 << 20)          # v7x: 64 MiB per TensorCore
    max_tile_b = 2048 if small_vmem else 4096    # v7x cap vs v5e/v6e
    vmem_limit = (40 << 20) if small_vmem else (64 << 20)

    tb = _select_tile_b(B, tile_b, max_tile_b)
    n_tiles = pl.cdiv(B, tb)

    # Candidate configs, best first; fall back to the previous known-good
    # configuration if the installed Pallas/Mosaic rejects a feature.
    candidates = []
    core_par = getattr(pltpu, "CORE_PARALLEL", None)
    if small_vmem and core_par is not None and n_tiles >= 2:
        # v7x: shard the batch grid over both TensorCores (mem-bound kernel).
        candidates.append(((core_par,), True))
    candidates.append((("parallel",), True))
    candidates.append((("parallel",), False))    # baseline (always supported)

    last_err = None
    for semantics, single_buf_w in candidates:
        try:
            call = _make_zmap_call(B, tb, x.dtype, w1.dtype, w2.dtype, out_dtype,
                                   semantics, single_buf_w, vmem_limit)
            return call(x, w1, w2)
        except Exception as e:  # unsupported feature on this jax/Mosaic version
            last_err = e
    raise last_err


def init_params(key, input_dim=INPUT_DIM, dim=HIDDEN_DIM, output_dim=OUTPUT_DIM):
    # Deterministic init mimicking PyTorch Linear default: U(-1/sqrt(fan_in), 1/sqrt(fan_in)).
    k1, k2 = jax.random.split(key)
    b1 = 1.0 / np.sqrt(input_dim)
    b2 = 1.0 / np.sqrt(dim)
    # Stored directly as (in, out) so the kernel does x @ W.
    w1 = jax.random.uniform(k1, (input_dim, dim), jnp.float32, -b1, b1)      # f32
    w2 = jax.random.uniform(k2, (dim, output_dim), jnp.float32, -b2, b2)
    w2 = w2.astype(jnp.bfloat16)  # stored bf16 -> no per-call convert / HBM trip
    return w1, w2


def zmap_reference(x, w1, w2):
    # Pure-JAX reference matching the kernel's compute path
    # (f32 first matmul, bf16-operand second matmul, f32 accumulation, f32 tanh).
    h = jnp.dot(x.astype(jnp.float32), w1.astype(jnp.float32),
                preferred_element_type=jnp.float32)
    h = jnp.maximum(h, 0.2 * h)
    y = jnp.dot(h.astype(jnp.bfloat16), w2.astype(jnp.bfloat16),
                preferred_element_type=jnp.float32)
    return jnp.tanh(y)


def zmap_reference_f32(x, w1, w2):
    # Full-f32 PyTorch-equivalent math.
    h = x @ w1.astype(jnp.float32)
    h = jnp.where(h > 0, h, 0.2 * h)
    return jnp.tanh(h @ w2.astype(jnp.float32))


if __name__ == "__main__":
    key = jax.random.PRNGKey(0)
    kx, kp = jax.random.split(key)

    B = 8  # Zmap default input_dim=8; small demo batch (forward does x.view(B, -1))
    x = jax.random.normal(kx, (B, INPUT_DIM), jnp.float32)
    w1, w2 = init_params(kp)

    out = zmap_forward(x, w1, w2)
    out = jax.block_until_ready(out)

    # Check against the matching mixed-precision reference.
    ref_match = zmap_reference(x, w1, w2)
    np.testing.assert_allclose(np.asarray(out, dtype=np.float32),
                               np.asarray(ref_match, dtype=np.float32),
                               rtol=5e-3, atol=5e-3)

    # Loose check against the full-f32 PyTorch-equivalent math (bf16 operand error).
    ref_f32 = zmap_reference_f32(x, w1, w2)
    np.testing.assert_allclose(np.asarray(out, dtype=np.float32),
                               np.asarray(ref_f32), rtol=2.5e-2, atol=2.5e-2)

    print("KERNEL_OK")
</pallas_src>

<mosaic_0001>
module attributes {stable_mosaic.version = 11 : i64} {
  func.func @zmap_kernel(%arg0: i32, %arg1: memref<8x8xf32, #tpu.memory_space<vmem>>, %arg2: memref<8x128xf32, #tpu.memory_space<vmem>>, %arg3: memref<128x512xbf16, #tpu.memory_space<vmem>>, %arg4: memref<8x512xf32, #tpu.memory_space<vmem>>) attributes {dimension_semantics = [#tpu.dimension_semantics<parallel>], iteration_bounds = array<i64: 1>, scalar_prefetch = 0 : i64, scratch_operands = 0 : i64, tpu.core_type = #tpu.core_type<tc>, window_params = [{transform_indices = @transform_0, window_bounds = array<i64: 8, 8>}, {pipeline_mode = #tpu.pipeline_mode<synchronous>, transform_indices = @transform_1, window_bounds = array<i64: 8, 128>}, {pipeline_mode = #tpu.pipeline_mode<synchronous>, transform_indices = @transform_2, window_bounds = array<i64: 128, 512>}, {transform_indices = @transform_3, window_bounds = array<i64: 8, 512>}]} {
    %c0 = arith.constant 0 : index
    %c0_0 = arith.constant 0 : index
    %0 = vector.load %arg1[%c0, %c0_0] : memref<8x8xf32, #tpu.memory_space<vmem>>, vector<8x8xf32>
    %c0_1 = arith.constant 0 : index
    %c0_2 = arith.constant 0 : index
    %1 = vector.load %arg2[%c0_1, %c0_2] : memref<8x128xf32, #tpu.memory_space<vmem>>, vector<8x128xf32>
    %cst = arith.constant dense<0.000000e+00> : vector<8x128xf32>
    %2 = tpu.matmul %0, %1, %cst {dimension_numbers = #tpu.dot_dimension_numbers<[1], [0], [0], [1], [0, 0, 1, 1], [], []>} : vector<8x8xf32>, vector<8x128xf32>, vector<8x128xf32> -> vector<8x128xf32>
    %cst_3 = arith.constant 2.000000e-01 : f32
    %3 = vector.broadcast %cst_3 : f32 to vector<8x128xf32>
    %4 = arith.mulf %3, %2 : vector<8x128xf32>
    %5 = arith.maximumf %2, %4 : vector<8x128xf32>
    %6 = arith.truncf %5 : vector<8x128xf32> to vector<8x128xbf16>
    %c0_4 = arith.constant 0 : index
    %c0_5 = arith.constant 0 : index
    %7 = vector.load %arg3[%c0_4, %c0_5] : memref<128x512xbf16, #tpu.memory_space<vmem>>, vector<128x512xbf16>
    %cst_6 = arith.constant dense<0.000000e+00> : vector<8x512xf32>
    %8 = tpu.matmul %6, %7, %cst_6 {dimension_numbers = #tpu.dot_dimension_numbers<[1], [0], [0], [1], [0, 0, 1, 1], [], []>} : vector<8x128xbf16>, vector<128x512xbf16>, vector<8x512xf32> -> vector<8x512xf32>
    %9 = math.tanh %8 : vector<8x512xf32>
    %c0_7 = arith.constant 0 : index
    %c0_8 = arith.constant 0 : index
    %10 = vector.load %arg4[%c0_7, %c0_8] : memref<8x512xf32, #tpu.memory_space<vmem>>, vector<8x512xf32>
    tpu.vector_store %arg4[%c0_7, %c0_8], %9 {strides = array<i32>} : memref<8x512xf32, #tpu.memory_space<vmem>>, vector<8x512xf32>,
    return
  }
  func.func @transform_0(%arg0: i32) -> (i32, i32) {
    %c0_i32 = arith.constant 0 : i32
    %c0_i32_0 = arith.constant 0 : i32
    return %arg0, %c0_i32 : i32, i32
  }
  func.func @transform_1(%arg0: i32) -> (i32, i32) {
    %c0_i32 = arith.constant 0 : i32
    %c0_i32_0 = arith.constant 0 : i32
    %c0_i32_1 = arith.constant 0 : i32
    return %c0_i32, %c0_i32_0 : i32, i32
  }
  func.func @transform_2(%arg0: i32) -> (i32, i32) {
    %c0_i32 = arith.constant 0 : i32
    %c0_i32_0 = arith.constant 0 : i32
    %c0_i32_1 = arith.constant 0 : i32
    return %c0_i32, %c0_i32_0 : i32, i32
  }
  func.func @transform_3(%arg0: i32) -> (i32, i32) {
    %c0_i32 = arith.constant 0 : i32
    %c0_i32_0 = arith.constant 0 : i32
    return %arg0, %c0_i32 : i32, i32
  }
}

module attributes {stable_mosaic.version = 11 : i64} {
  func.func @zmap_kernel(%arg0: i32, %arg1: memref<8x8xf32, #tpu.memory_space<vmem>>, %arg2: memref<8x128xf32, #tpu.memory_space<vmem>>, %arg3: memref<128x512xbf16, #tpu.memory_space<vmem>>, %arg4: memref<8x512xf32, #tpu.memory_space<vmem>>) attributes {dimension_semantics = [#tpu.dimension_semantics<parallel>], iteration_bounds = array<i64: 1>, scalar_prefetch = 0 : i64, scratch_operands = 0 : i64, tpu.core_type = #tpu.core_type<tc>, window_params = [{transform_indices = @transform_0, window_bounds = array<i64: 8, 8>}, {pipeline_mode = #tpu.pipeline_mode<synchronous>, transform_indices = @transform_1, window_bounds = array<i64: 8, 128>}, {pipeline_mode = #tpu.pipeline_mode<synchronous>, transform_indices = @transform_2, window_bounds = array<i64: 128, 512>}, {transform_indices = @transform_3, window_bounds = array<i64: 8, 512>}]} {
    %c0 = arith.constant 0 : index
    %c0_0 = arith.constant 0 : index
    %0 = vector.load %arg1[%c0, %c0_0] : memref<8x8xf32, #tpu.memory_space<vmem>>, vector<8x8xf32>
    %c0_1 = arith.constant 0 : index
    %c0_2 = arith.constant 0 : index
    %1 = vector.load %arg2[%c0_1, %c0_2] : memref<8x128xf32, #tpu.memory_space<vmem>>, vector<8x128xf32>
    %cst = arith.constant dense<0.000000e+00> : vector<8x128xf32>
    %2 = tpu.matmul %0, %1, %cst {dimension_numbers = #tpu.dot_dimension_numbers<[1], [0], [0], [1], [0, 0, 1, 1], [], []>} : vector<8x8xf32>, vector<8x128xf32>, vector<8x128xf32> -> vector<8x128xf32>
    %cst_3 = arith.constant 2.000000e-01 : f32
    %3 = vector.broadcast %cst_3 : f32 to vector<8x128xf32>
    %4 = arith.mulf %3, %2 : vector<8x128xf32>
    %5 = arith.maximumf %2, %4 : vector<8x128xf32>
    %6 = arith.truncf %5 : vector<8x128xf32> to vector<8x128xbf16>
    %c0_4 = arith.constant 0 : index
    %c0_5 = arith.constant 0 : index
    %7 = vector.load %arg3[%c0_4, %c0_5] : memref<128x512xbf16, #tpu.memory_space<vmem>>, vector<128x512xbf16>
    %cst_6 = arith.constant dense<0.000000e+00> : vector<8x512xf32>
    %8 = tpu.matmul %6, %7, %cst_6 {dimension_numbers = #tpu.dot_dimension_numbers<[1], [0], [0], [1], [0, 0, 1, 1], [], []>} : vector<8x128xbf16>, vector<128x512xbf16>, vector<8x512xf32> -> vector<8x512xf32>
    %9 = math.tanh %8 : vector<8x512xf32>
    %c0_7 = arith.constant 0 : index
    %c0_8 = arith.constant 0 : index
    %10 = vector.load %arg4[%c0_7, %c0_8] : memref<8x512xf32, #tpu.memory_space<vmem>>, vector<8x512xf32>
    tpu.vector_store %arg4[%c0_7, %c0_8], %9 {strides = array<i32>} : memref<8x512xf32, #tpu.memory_space<vmem>>, vector<8x512xf32>,
    return
  }
  func.func @transform_0(%arg0: i32) -> (i32, i32) {
    %c0_i32 = arith.constant 0 : i32
    %c0_i32_0 = arith.constant 0 : i32
    return %arg0, %c0_i32 : i32, i32
  }
  func.func @transform_1(%arg0: i32) -> (i32, i32) {
    %c0_i32 = arith.constant 0 : i32
    %c0_i32_0 = arith.constant 0 : i32
    %c0_i32_1 = arith.constant 0 : i32
    return %c0_i32, %c0_i32_0 : i32, i32
  }
  func.func @transform_2(%arg0: i32) -> (i32, i32) {
    %c0_i32 = arith.constant 0 : i32
    %c0_i32_0 = arith.constant 0 : i32
    %c0_i32_1 = arith.constant 0 : i32
    return %c0_i32, %c0_i32_0 : i32, i32
  }
  func.func @transform_3(%arg0: i32) -> (i32, i32) {
    %c0_i32 = arith.constant 0 : i32
    %c0_i32_0 = arith.constant 0 : i32
    return %arg0, %c0_i32 : i32, i32
  }
}

</mosaic_0001>

<llo_original>
// kernel: tpu_custom_call.1
$region0: #{tpu_custom_call.1}
  #allocation0 [shape = 'u32[]', space=smem, size = 0x4, offset = 0x4, fixed_abs, tag = 'smem constant byte address 0x4 - core index']
  #allocation1 [shape = 'u32[144,128]{1,0:T(1,128)}', space=vmem, size = 0x12000, scoped, tag = 'internal scratch']
  %s0 = inlined_call_operand.hbm [shape: f32[8,8], index: 0, kind: input, shape index: {}]
  %s1 = inlined_call_operand.hbm [shape: f32[8,128], index: 1, kind: input, shape index: {}]
  %s2 = inlined_call_operand.hbm [shape: bf16[128,512], index: 2, kind: input, shape index: {}]
  %s3 = inlined_call_operand.hbm [shape: f32[8,512], index: 3, kind: output, shape index: {}]
  %s4 = sld [smem:[#allocation0]]
  $region34: #{tpu_custom_call.1} parent=0
    _
  %s6 = ssub.s32 1, %s4
  %s7 = scalar_select 0, %s6, %s4
  $region1: #{tpu_custom_call.1} parent=0
    #allocation2 [shape = 'u8[4096]{0}', space=vmem, size = 0x1000, scoped, tag = 'input window, operand 0, single buffered']
    #allocation3 [shape = 's32[1]{0}', space=sflag, size = 0x4, scoped, tag = 'scoped memory for tpu_custom_call.1']
    #allocation4 [shape = 's32[1]{0}', space=sflag, size = 0x4, scoped, tag = 'scoped memory for tpu_custom_call.1']
    #allocation5 [shape = 'u8[4096]{0}', space=vmem, size = 0x1000, scoped, tag = 'input window, operand 1, single buffered']
    #allocation6 [shape = 's32[1]{0}', space=sflag, size = 0x4, scoped, tag = 'scoped memory for tpu_custom_call.1']
    #allocation7 [shape = 'u8[131072]{0}', space=vmem, size = 0x20000, scoped, tag = 'input window, operand 2, single buffered']
    #allocation8 [shape = 'u8[16384]{0}', space=vmem, size = 0x4000, scoped, tag = 'output window, operand 0, single buffered']
    %8 = vsyncpa [#allocation3], 0
    %9 = vsyncpa [#allocation6], 0
    %10 = vsyncpa [#allocation4], 0
    // Predicated region
    $region2: #{tpu_custom_call.1} parent=1 // pred_check
      _
    $region3: #{tpu_custom_call.1} parent=1 // pred_check_branch
      %12 = sbr.rel (0) target = $region5
    $region4: #{tpu_custom_call.1} parent=1 // pred_region
      %s14 = ssub.s32 128, 128
      %15 = vsyncadd [#allocation3], %s14
      %s17 = sshll.u32 [#allocation2], 4
      %s18 = int_to_ptr.vmem [resolvable:$true] %s17
      %20 = dma.hbm_to_vmem [thread:$0]  %s0, 128, %s18, [#allocation3]
    $region5: #{tpu_custom_call.1} parent=1 // pred_fallthru
      _
    // Predicated region
    $region6: #{tpu_custom_call.1} parent=1 // pred_check
      _
    $region7: #{tpu_custom_call.1} parent=1 // pred_check_branch
      %22 = sbr.rel (0) target = $region9
    $region8: #{tpu_custom_call.1} parent=1 // pred_region
      %s24 = ssub.s32 128, 128
      %25 = vsyncadd [#allocation6], %s24
      %s27 = sshll.u32 [#allocation5], 4
      %s28 = int_to_ptr.vmem [resolvable:$true] %s27
      %30 = dma.hbm_to_vmem [thread:$0]  %s1, 128, %s28, [#allocation6]
    $region9: #{tpu_custom_call.1} parent=1 // pred_fallthru
      _
    // Predicated region
    $region10: #{tpu_custom_call.1} parent=1 // pred_check
      _
    $region11: #{tpu_custom_call.1} parent=1 // pred_check_branch
      %32 = sbr.rel (0) target = $region13
    $region12: #{tpu_custom_call.1} parent=1 // pred_region
      %s34 = ssub.s32 4096, 4096
      %35 = vsyncadd [#allocation6], %s34
      %s36 = sshll.u32 [#allocation7], 4
      %s37 = int_to_ptr.vmem [resolvable:$true] %s36
      %42 = dma.hbm_to_vmem [thread:$0]  %s2, 4096, %s37, [#allocation6], 256, 256, 16
    $region13: #{tpu_custom_call.1} parent=1 // pred_fallthru
      _
    // Predicated region
    $region14: #{tpu_custom_call.1} parent=1 // pred_check
      _
    $region15: #{tpu_custom_call.1} parent=1 // pred_check_branch
      %44 = sbr.rel (0) target = $region17
    $region16: #{tpu_custom_call.1} parent=1 // pred_region
      %45 = dma.done [#allocation3], 128
    $region17: #{tpu_custom_call.1} parent=1 // pred_fallthru
      _
    // Predicated region
    $region18: #{tpu_custom_call.1} parent=1 // pred_check
      _
    $region19: #{tpu_custom_call.1} parent=1 // pred_check_branch
      %47 = sbr.rel (0) target = $region21
    $region20: #{tpu_custom_call.1} parent=1 // pred_region
      %48 = dma.done [#allocation6], 128
    $region21: #{tpu_custom_call.1} parent=1 // pred_fallthru
      _
    // Predicated region
    $region22: #{tpu_custom_call.1} parent=1 // pred_check
      _
    $region23: #{tpu_custom_call.1} parent=1 // pred_check_branch
      %50 = sbr.rel (0) target = $region25
    $region24: #{tpu_custom_call.1} parent=1 // pred_region
      %51 = dma.done [#allocation6], 4096
    $region25: #{tpu_custom_call.1} parent=1 // pred_fallthru
      _
    %v53 = vld [vmem:[#allocation2] sm:$0xff]
    %v54 = vld [vmem:[#allocation5] sm:$0xff]
    %vm55 = vcmask 64512
    %v57 = vsel %vm55, %v53, 0
    %59 = vmatprep.subr.mxu0 0.0
    %60 = vmatpush1.msra.mxu0 0.0
    %61 = vmatprep.subr.mxu0 0.0
    %62 = vmatpush1.msra.mxu0 0.0
    %63 = vmatprep.subr.mxu0 0.0
    %64 = vmatpush1.msra.mxu0 0.0
    %65 = vmatprep.subr.mxu0 0.0
    %66 = vmatpush1.msra.mxu0 0.0
    %67 = vmatprep.subr.mxu0 0.0
    %68 = vmatpush1.msra.mxu0 0.0
    %69 = vmatprep.subr.mxu0 0.0
    %70 = vmatpush1.msra.mxu0 0.0
    %71 = vmatprep.subr.mxu0 0.0
    %72 = vmatpush1.msra.mxu0 0.0
    %73 = vmatprep.subr.mxu0 0.0
    %74 = vmatpush1.msra.mxu0 0.0
    %75 = vmatprep.subr.mxu0 0.0
    %76 = vmatpush1.msra.mxu0 0.0
    %77 = vmatprep.subr.mxu0 0.0
    %78 = vmatpush1.msra.mxu0 0.0
    %79 = vmatprep.subr.mxu0 0.0
    %80 = vmatpush1.msra.mxu0 0.0
    %81 = vmatprep.subr.mxu0 0.0
    %82 = vmatpush1.msra.mxu0 0.0
    %83 = vmatprep.subr.mxu0 0.0
    %84 = vmatpush1.msra.mxu0 0.0
    %85 = vmatprep.subr.mxu0 0.0
    %86 = vmatpush1.msra.mxu0 0.0
    %87 = vmatprep.subr.mxu0 0.0
    %88 = vmatpush1.msra.mxu0 0.0
    %89 = vmatprep.subr.mxu0 0.0
    %90 = vmatpush1.msra.mxu0 %v54
    %91 = vmatprep.subr.mxu0 0.0
    %92 = vmatpush2.msra.mxu0 0.0
    %93 = vmatprep.subr.mxu0 0.0
    %94 = vmatpush2.msra.mxu0 0.0
    %95 = vmatprep.subr.mxu0 0.0
    %96 = vmatpush2.msra.mxu0 0.0
    %97 = vmatprep.subr.mxu0 0.0
    %98 = vmatpush2.msra.mxu0 0.0
    %99 = vmatprep.subr.mxu0 0.0
    %100 = vmatpush2.msra.mxu0 0.0
    %101 = vmatprep.subr.mxu0 0.0
    %102 = vmatpush2.msra.mxu0 0.0
    %103 = vmatprep.subr.mxu0 0.0
    %104 = vmatpush2.msra.mxu0 0.0
    %105 = vmatprep.subr.mxu0 0.0
    %106 = vmatpush2.msra.mxu0 0.0
    %107 = vmatprep.subr.mxu0 0.0
    %108 = vmatpush2.msra.mxu0 0.0
    %109 = vmatprep.subr.mxu0 0.0
    %110 = vmatpush2.msra.mxu0 0.0
    %111 = vmatprep.subr.mxu0 0.0
    %112 = vmatpush2.msra.mxu0 0.0
    %113 = vmatprep.subr.mxu0 0.0
    %114 = vmatpush2.msra.mxu0 0.0
    %115 = vmatprep.subr.mxu0 0.0
    %116 = vmatpush2.msra.mxu0 0.0
    %117 = vmatprep.subr.mxu0 0.0
    %118 = vmatpush2.msra.mxu0 0.0
    %119 = vmatprep.subr.mxu0 0.0
    %120 = vmatpush2.msra.mxu0 0.0
    %121 = vmatprep.subr.mxu0 0.0
    %122 = vmatpush2.msra.mxu0 0.0
    %123 = vmatprep.mubr.f32.mxu0 0.0
    %124 = vmatmul.mubr.f32.gmra.mxu0 %v57
    %v125 = vpop.f32.mrf.mxu0
    %v126 = vadd.f32 0.0, %v125
    %v127 = vpop.f32.mrf.mxu0
    %128 = vdwg.mxu0
    %v129 = vmul.f32 %v126, 0.2
    %v130 = vmax.f32 %v126, %v129
    %v131 = vpack.c.bf16 %v130, %v130
    %v132 = vld [vmem:[#allocation7] sm:$0xff]
    %v133 = vld [vmem:[#allocation7 + $0x8] sm:$0xff]
    %v134 = vld [vmem:[#allocation7 + $0x10] sm:$0xff]
    %v135 = vld [vmem:[#allocation7 + $0x18] sm:$0xff]
    %v136 = vld [vmem:[#allocation7 + $0x20] sm:$0xff]
    %v137 = vld [vmem:[#allocation7 + $0x28] sm:$0xff]
    %v138 = vld [vmem:[#allocation7 + $0x30] sm:$0xff]
    %v139 = vld [vmem:[#allocation7 + $0x38] sm:$0xff]
    %v140 = vld [vmem:[#allocation7 + $0x40] sm:$0xff]
    %v141 = vld [vmem:[#allocation7 + $0x48] sm:$0xff]
    %v142 = vld [vmem:[#allocation7 + $0x50] sm:$0xff]
    %v143 = vld [vmem:[#allocation7 + $0x58] sm:$0xff]
    %v144 = vld [vmem:[#allocation7 + $0x60] sm:$0xff]
    %v145 = vld [vmem:[#allocation7 + $0x68] sm:$0xff]
    %v146 = vld [vmem:[#allocation7 + $0x70] sm:$0xff]
    %v147 = vld [vmem:[#allocation7 + $0x78] sm:$0xff]
    %v148 = vld [vmem:[#allocation7 + $0x80] sm:$0xff]
    %v149 = vld [vmem:[#allocation7 + $0x88] sm:$0xff]
    %v150 = vld [vmem:[#allocation7 + $0x90] sm:$0xff]
    %v151 = vld [vmem:[#allocation7 + $0x98] sm:$0xff]
    %v152 = vld [vmem:[#allocation7 + $0xa0] sm:$0xff]
    %v153 = vld [vmem:[#allocation7 + $0xa8] sm:$0xff]
    %v154 = vld [vmem:[#allocation7 + $0xb0] sm:$0xff]
    %v155 = vld [vmem:[#allocation7 + $0xb8] sm:$0xff]
    %v156 = vld [vmem:[#allocation7 + $0xc0] sm:$0xff]
    %v157 = vld [vmem:[#allocation7 + $0xc8] sm:$0xff]
    %v158 = vld [vmem:[#allocation7 + $0xd0] sm:$0xff]
    %v159 = vld [vmem:[#allocation7 + $0xd8] sm:$0xff]
    %v160 = vld [vmem:[#allocation7 + $0xe0] sm:$0xff]
    %v161 = vld [vmem:[#allocation7 + $0xe8] sm:$0xff]
    %v162 = vld [vmem:[#allocation7 + $0xf0] sm:$0xff]
    %v163 = vld [vmem:[#allocation7 + $0xf8] sm:$0xff]
    %v196 = vunpack.c.l.b16 %v132
    %v197 = vunpack.c.h.b16 %v132
    %v198 = vunpack.c.l.b16 %v133
    %v199 = vunpack.c.h.b16 %v133
    %v200 = vunpack.c.l.b16 %v134
    %v201 = vunpack.c.h.b16 %v134
    %v202 = vunpack.c.l.b16 %v135
    %v203 = vunpack.c.h.b16 %v135
    %v204 = vunpack.c.l.b16 %v136
    %v205 = vunpack.c.h.b16 %v136
    %v206 = vunpack.c.l.b16 %v137
    %v207 = vunpack.c.h.b16 %v137
    %v208 = vunpack.c.l.b16 %v138
    %v209 = vunpack.c.h.b16 %v138
    %v210 = vunpack.c.l.b16 %v139
    %v211 = vunpack.c.h.b16 %v139
    %v212 = vunpack.c.l.b16 %v140
    %v213 = vunpack.c.h.b16 %v140
    %v214 = vunpack.c.l.b16 %v141
    %v215 = vunpack.c.h.b16 %v141
    %v216 = vunpack.c.l.b16 %v142
    %v217 = vunpack.c.h.b16 %v142
    %v218 = vunpack.c.l.b16 %v143
    %v219 = vunpack.c.h.b16 %v143
    %v220 = vunpack.c.l.b16 %v144
    %v221 = vunpack.c.h.b16 %v144
    %v222 = vunpack.c.l.b16 %v145
    %v223 = vunpack.c.h.b16 %v145
    %v224 = vunpack.c.l.b16 %v146
    %v225 = vunpack.c.h.b16 %v146
    %v226 = vunpack.c.l.b16 %v147
    %v227 = vunpack.c.h.b16 %v147
    %v228 = vunpack.c.l.b16 %v148
    %v229 = vunpack.c.h.b16 %v148
    %v230 = vunpack.c.l.b16 %v149
    %v231 = vunpack.c.h.b16 %v149
    %v232 = vunpack.c.l.b16 %v150
    %v233 = vunpack.c.h.b16 %v150
    %v234 = vunpack.c.l.b16 %v151
    %v235 = vunpack.c.h.b16 %v151
    %v236 = vunpack.c.l.b16 %v152
    %v237 = vunpack.c.h.b16 %v152
    %v238 = vunpack.c.l.b16 %v153
    %v239 = vunpack.c.h.b16 %v153
    %v240 = vunpack.c.l.b16 %v154
    %v241 = vunpack.c.h.b16 %v154
    %v242 = vunpack.c.l.b16 %v155
    %v243 = vunpack.c.h.b16 %v155
    %v244 = vunpack.c.l.b16 %v156
    %v245 = vunpack.c.h.b16 %v156
    %v246 = vunpack.c.l.b16 %v157
    %v247 = vunpack.c.h.b16 %v157
    %v248 = vunpack.c.l.b16 %v158
    %v249 = vunpack.c.h.b16 %v158
    %v250 = vunpack.c.l.b16 %v159
    %v251 = vunpack.c.h.b16 %v159
    %v252 = vunpack.c.l.b16 %v160
    %v253 = vunpack.c.h.b16 %v160
    %v254 = vunpack.c.l.b16 %v161
    %v255 = vunpack.c.h.b16 %v161
    %v256 = vunpack.c.l.b16 %v162
    %v257 = vunpack.c.h.b16 %v162
    %v258 = vunpack.c.l.b16 %v163
    %v259 = vunpack.c.h.b16 %v163
    %v260 = vpack.c.b16 %v200, %v196
    %v261 = vpack.c.b16 %v201, %v197
    %v262 = vpack.c.b16 %v202, %v198
    %v263 = vpack.c.b16 %v203, %v199
    %v264 = vpack.c.b16 %v208, %v204
    %v265 = vpack.c.b16 %v209, %v205
    %v266 = vpack.c.b16 %v210, %v206
    %v267 = vpack.c.b16 %v211, %v207
    %v268 = vpack.c.b16 %v216, %v212
    %v269 = vpack.c.b16 %v217, %v213
    %v270 = vpack.c.b16 %v218, %v214
    %v271 = vpack.c.b16 %v219, %v215
    %v272 = vpack.c.b16 %v224, %v220
    %v273 = vpack.c.b16 %v225, %v221
    %v274 = vpack.c.b16 %v226, %v222
    %v275 = vpack.c.b16 %v227, %v223
    %v276 = vpack.c.b16 %v232, %v228
    %v277 = vpack.c.b16 %v233, %v229
    %v278 = vpack.c.b16 %v234, %v230
    %v279 = vpack.c.b16 %v235, %v231
    %v280 = vpack.c.b16 %v240, %v236
    %v281 = vpack.c.b16 %v241, %v237
    %v282 = vpack.c.b16 %v242, %v238
    %v283 = vpack.c.b16 %v243, %v239
    %v284 = vpack.c.b16 %v248, %v244
    %v285 = vpack.c.b16 %v249, %v245
    %v286 = vpack.c.b16 %v250, %v246
    %v287 = vpack.c.b16 %v251, %v247
    %v288 = vpack.c.b16 %v256, %v252
    %v289 = vpack.c.b16 %v257, %v253
    %v290 = vpack.c.b16 %v258, %v254
    %v291 = vpack.c.b16 %v259, %v255
    %324 = vmatprep.subr.bf16.mxu0 %v289
    %325 = vmatpush1.bf16.msra.mxu0 %v288
    %326 = vmatprep.subr.bf16.mxu0 %v285
    %327 = vmatpush1.bf16.msra.mxu0 %v284
    %328 = vmatprep.subr.bf16.mxu0 %v281
    %329 = vmatpush1.bf16.msra.mxu0 %v280
    %330 = vmatprep.subr.bf16.mxu0 %v277
    %331 = vmatpush1.bf16.msra.mxu0 %v276
    %332 = vmatprep.subr.bf16.mxu0 %v273
    %333 = vmatpush1.bf16.msra.mxu0 %v272
    %334 = vmatprep.subr.bf16.mxu0 %v269
    %335 = vmatpush1.bf16.msra.mxu0 %v268
    %336 = vmatprep.subr.bf16.mxu0 %v265
    %337 = vmatpush1.bf16.msra.mxu0 %v264
    %338 = vmatprep.subr.bf16.mxu0 %v261
    %339 = vmatpush1.bf16.msra.mxu0 %v260
    %340 = vmatprep.subr.bf16.mxu0 0
    %341 = vmatpush2.bf16.msra.mxu0 0
    %342 = vmatprep.subr.bf16.mxu0 0
    %343 = vmatpush2.bf16.msra.mxu0 0
    %344 = vmatprep.subr.bf16.mxu0 0
    %345 = vmatpush2.bf16.msra.mxu0 0
    %346 = vmatprep.subr.bf16.mxu0 0
    %347 = vmatpush2.bf16.msra.mxu0 0
    %348 = vmatprep.subr.bf16.mxu0 0
    %349 = vmatpush2.bf16.msra.mxu0 0
    %350 = vmatprep.subr.bf16.mxu0 0
    %351 = vmatpush2.bf16.msra.mxu0 0
    %352 = vmatprep.subr.bf16.mxu0 0
    %353 = vmatpush2.bf16.msra.mxu0 0
    %354 = vmatprep.subr.bf16.mxu0 0
    %355 = vmatpush2.bf16.msra.mxu0 0
    %356 = vmatprep.mubr.bf16.mxu0 0
    %357 = vmatmul.mubr.bf16.gmra.mxu0 %v131
    %v358 = vpop.f32.mrf.mxu0
    %v359 = vadd.f32 0.0, %v358
    %v360 = vpop.f32.mrf.mxu0
    %v361 = vadd.f32 0.0, %v360
    %v362 = vpop.f32.mrf.mxu0
    %v363 = vpop.f32.mrf.mxu0
    %364 = vdwg.mxu0
    %365 = vmatprep.subr.bf16.mxu0 %v291
    %366 = vmatpush1.bf16.msra.mxu0 %v290
    %367 = vmatprep.subr.bf16.mxu0 %v287
    %368 = vmatpush1.bf16.msra.mxu0 %v286
    %369 = vmatprep.subr.bf16.mxu0 %v283
    %370 = vmatpush1.bf16.msra.mxu0 %v282
    %371 = vmatprep.subr.bf16.mxu0 %v279
    %372 = vmatpush1.bf16.msra.mxu0 %v278
    %373 = vmatprep.subr.bf16.mxu0 %v275
    %374 = vmatpush1.bf16.msra.mxu0 %v274
    %375 = vmatprep.subr.bf16.mxu0 %v271
    %376 = vmatpush1.bf16.msra.mxu0 %v270
    %377 = vmatprep.subr.bf16.mxu0 %v267
    %378 = vmatpush1.bf16.msra.mxu0 %v266
    %379 = vmatprep.subr.bf16.mxu0 %v263
    %380 = vmatpush1.bf16.msra.mxu0 %v262
    %381 = vmatprep.subr.bf16.mxu0 0
    %382 = vmatpush2.bf16.msra.mxu0 0
    %383 = vmatprep.subr.bf16.mxu0 0
    %384 = vmatpush2.bf16.msra.mxu0 0
    %385 = vmatprep.subr.bf16.mxu0 0
    %386 = vmatpush2.bf16.msra.mxu0 0
    %387 = vmatprep.subr.bf16.mxu0 0
    %388 = vmatpush2.bf16.msra.mxu0 0
    %389 = vmatprep.subr.bf16.mxu0 0
    %390 = vmatpush2.bf16.msra.mxu0 0
    %391 = vmatprep.subr.bf16.mxu0 0
    %392 = vmatpush2.bf16.msra.mxu0 0
    %393 = vmatprep.subr.bf16.mxu0 0
    %394 = vmatpush2.bf16.msra.mxu0 0
    %395 = vmatprep.subr.bf16.mxu0 0
    %396 = vmatpush2.bf16.msra.mxu0 0
    %397 = vmatprep.mubr.bf16.mxu0 0
    %398 = vmatmul.mubr.bf16.gmra.mxu0 %v131
    %v399 = vpop.f32.mrf.mxu0
    %v400 = vadd.f32 0.0, %v399
    %v401 = vpop.f32.mrf.mxu0
    %v402 = vadd.f32 0.0, %v401
    %v403 = vpop.f32.mrf.mxu0
    %v404 = vpop.f32.mrf.mxu0
    %405 = vdwg.mxu0
    %v406 = vtanh.pop %v359
    %v407 = vtanh.pop %v361
    %v408 = vtanh.pop %v400
    %v409 = vtanh.pop %v402
    %410 = vst [vmem:[#allocation8] sm:$0xff] %v406
    %411 = vst [vmem:[#allocation8 + $0x8] sm:$0xff] %v407
    %412 = vst [vmem:[#allocation8 + $0x10] sm:$0xff] %v408
    %413 = vst [vmem:[#allocation8 + $0x18] sm:$0xff] %v409
    // Predicated region
    $region26: #{tpu_custom_call.1} parent=1 // pred_check
      _
    $region27: #{tpu_custom_call.1} parent=1 // pred_check_branch
      %415 = sbr.rel (0) target = $region29
    $region28: #{tpu_custom_call.1} parent=1 // pred_region
      %s417 = ssub.s32 512, 512
      %418 = vsyncadd [#allocation4], %s417
      %s420 = sshll.u32 [#allocation8], 4
      %s421 = int_to_ptr.vmem [resolvable:$true] %s420
      %423 = dma.vmem_to_hbm [thread:$0]  %s421, 512, %s3, [#allocation4]
    $region29: #{tpu_custom_call.1} parent=1 // pred_fallthru
      _
    // Predicated region
    $region30: #{tpu_custom_call.1} parent=1 // pred_check
      _
    $region31: #{tpu_custom_call.1} parent=1 // pred_check_branch
      %425 = sbr.rel (0) target = $region33
    $region32: #{tpu_custom_call.1} parent=1 // pred_region
      %426 = dma.done [#allocation4], 512
    $region33: #{tpu_custom_call.1} parent=1 // pred_fallthru
      _
    %427 = vsyncpa [#allocation3], 1
    %428 = vsyncpa [#allocation6], 1
    %429 = vsyncpa [#allocation4], 1

// kernel: tpu_custom_call.1
$region0: #{tpu_custom_call.1}
  #allocation0 [shape = 'u32[]', space=smem, size = 0x4, offset = 0x4, fixed_abs, tag = 'smem constant byte address 0x4 - core index']
  #allocation1 [shape = 'u32[144,128]{1,0:T(1,128)}', space=vmem, size = 0x12000, scoped, tag = 'internal scratch']
  %s0 = inlined_call_operand.hbm [shape: f32[8,8], index: 0, kind: input, shape index: {}]
  %s1 = inlined_call_operand.hbm [shape: f32[8,128], index: 1, kind: input, shape index: {}]
  %s2 = inlined_call_operand.hbm [shape: bf16[128,512], index: 2, kind: input, shape index: {}]
  %s3 = inlined_call_operand.hbm [shape: f32[8,512], index: 3, kind: output, shape index: {}]
  %s4 = sld [smem:[#allocation0]]
  $region34: #{tpu_custom_call.1} parent=0
    _
  %s6 = ssub.s32 1, %s4
  %s7 = scalar_select 0, %s6, %s4
  $region1: #{tpu_custom_call.1} parent=0
    #allocation2 [shape = 'u8[4096]{0}', space=vmem, size = 0x1000, scoped, tag = 'input window, operand 0, single buffered']
    #allocation3 [shape = 's32[1]{0}', space=sflag, size = 0x4, scoped, tag = 'scoped memory for tpu_custom_call.1']
    #allocation4 [shape = 's32[1]{0}', space=sflag, size = 0x4, scoped, tag = 'scoped memory for tpu_custom_call.1']
    #allocation5 [shape = 'u8[4096]{0}', space=vmem, size = 0x1000, scoped, tag = 'input window, operand 1, single buffered']
    #allocation6 [shape = 's32[1]{0}', space=sflag, size = 0x4, scoped, tag = 'scoped memory for tpu_custom_call.1']
    #allocation7 [shape = 'u8[131072]{0}', space=vmem, size = 0x20000, scoped, tag = 'input window, operand 2, single buffered']
    #allocation8 [shape = 'u8[16384]{0}', space=vmem, size = 0x4000, scoped, tag = 'output window, operand 0, single buffered']
    %8 = vsyncpa [#allocation3], 0
    %9 = vsyncpa [#allocation6], 0
    %10 = vsyncpa [#allocation4], 0
    // Predicated region
    $region2: #{tpu_custom_call.1} parent=1 // pred_check
      _
    $region3: #{tpu_custom_call.1} parent=1 // pred_check_branch
      %12 = sbr.rel (0) target = $region5
    $region4: #{tpu_custom_call.1} parent=1 // pred_region
      %s14 = ssub.s32 128, 128
      %15 = vsyncadd [#allocation3], %s14
      %s17 = sshll.u32 [#allocation2], 4
      %s18 = int_to_ptr.vmem [resolvable:$true] %s17
      %20 = dma.hbm_to_vmem [thread:$0]  %s0, 128, %s18, [#allocation3]
    $region5: #{tpu_custom_call.1} parent=1 // pred_fallthru
      _
    // Predicated region
    $region6: #{tpu_custom_call.1} parent=1 // pred_check
      _
    $region7: #{tpu_custom_call.1} parent=1 // pred_check_branch
      %22 = sbr.rel (0) target = $region9
    $region8: #{tpu_custom_call.1} parent=1 // pred_region
      %s24 = ssub.s32 128, 128
      %25 = vsyncadd [#allocation6], %s24
      %s27 = sshll.u32 [#allocation5], 4
      %s28 = int_to_ptr.vmem [resolvable:$true] %s27
      %30 = dma.hbm_to_vmem [thread:$0]  %s1, 128, %s28, [#allocation6]
    $region9: #{tpu_custom_call.1} parent=1 // pred_fallthru
      _
    // Predicated region
    $region10: #{tpu_custom_call.1} parent=1 // pred_check
      _
    $region11: #{tpu_custom_call.1} parent=1 // pred_check_branch
      %32 = sbr.rel (0) target = $region13
    $region12: #{tpu_custom_call.1} parent=1 // pred_region
      %s34 = ssub.s32 4096, 4096
      %35 = vsyncadd [#allocation6], %s34
      %s36 = sshll.u32 [#allocation7], 4
      %s37 = int_to_ptr.vmem [resolvable:$true] %s36
      %42 = dma.hbm_to_vmem [thread:$0]  %s2, 4096, %s37, [#allocation6], 256, 256, 16
    $region13: #{tpu_custom_call.1} parent=1 // pred_fallthru
      _
    // Predicated region
    $region14: #{tpu_custom_call.1} parent=1 // pred_check
      _
    $region15: #{tpu_custom_call.1} parent=1 // pred_check_branch
      %44 = sbr.rel (0) target = $region17
    $region16: #{tpu_custom_call.1} parent=1 // pred_region
      %45 = dma.done [#allocation3], 128
    $region17: #{tpu_custom_call.1} parent=1 // pred_fallthru
      _
    // Predicated region
    $region18: #{tpu_custom_call.1} parent=1 // pred_check
      _
    $region19: #{tpu_custom_call.1} parent=1 // pred_check_branch
      %47 = sbr.rel (0) target = $region21
    $region20: #{tpu_custom_call.1} parent=1 // pred_region
      %48 = dma.done [#allocation6], 128
    $region21: #{tpu_custom_call.1} parent=1 // pred_fallthru
      _
    // Predicated region
    $region22: #{tpu_custom_call.1} parent=1 // pred_check
      _
    $region23: #{tpu_custom_call.1} parent=1 // pred_check_branch
      %50 = sbr.rel (0) target = $region25
    $region24: #{tpu_custom_call.1} parent=1 // pred_region
      %51 = dma.done [#allocation6], 4096
    $region25: #{tpu_custom_call.1} parent=1 // pred_fallthru
      _
    %v53 = vld [vmem:[#allocation2] sm:$0xff]
    %v54 = vld [vmem:[#allocation5] sm:$0xff]
    %vm55 = vcmask 64512
    %v57 = vsel %vm55, %v53, 0
    %59 = vmatprep.subr.mxu0 0.0
    %60 = vmatpush1.msra.mxu0 0.0
    %61 = vmatprep.subr.mxu0 0.0
    %62 = vmatpush1.msra.mxu0 0.0
    %63 = vmatprep.subr.mxu0 0.0
    %64 = vmatpush1.msra.mxu0 0.0
    %65 = vmatprep.subr.mxu0 0.0
    %66 = vmatpush1.msra.mxu0 0.0
    %67 = vmatprep.subr.mxu0 0.0
    %68 = vmatpush1.msra.mxu0 0.0
    %69 = vmatprep.subr.mxu0 0.0
    %70 = vmatpush1.msra.mxu0 0.0
    %71 = vmatprep.subr.mxu0 0.0
    %72 = vmatpush1.msra.mxu0 0.0
    %73 = vmatprep.subr.mxu0 0.0
    %74 = vmatpush1.msra.mxu0 0.0
    %75 = vmatprep.subr.mxu0 0.0
    %76 = vmatpush1.msra.mxu0 0.0
    %77 = vmatprep.subr.mxu0 0.0
    %78 = vmatpush1.msra.mxu0 0.0
    %79 = vmatprep.subr.mxu0 0.0
    %80 = vmatpush1.msra.mxu0 0.0
    %81 = vmatprep.subr.mxu0 0.0
    %82 = vmatpush1.msra.mxu0 0.0
    %83 = vmatprep.subr.mxu0 0.0
    %84 = vmatpush1.msra.mxu0 0.0
    %85 = vmatprep.subr.mxu0 0.0
    %86 = vmatpush1.msra.mxu0 0.0
    %87 = vmatprep.subr.mxu0 0.0
    %88 = vmatpush1.msra.mxu0 0.0
    %89 = vmatprep.subr.mxu0 0.0
    %90 = vmatpush1.msra.mxu0 %v54
    %91 = vmatprep.subr.mxu0 0.0
    %92 = vmatpush2.msra.mxu0 0.0
    %93 = vmatprep.subr.mxu0 0.0
    %94 = vmatpush2.msra.mxu0 0.0
    %95 = vmatprep.subr.mxu0 0.0
    %96 = vmatpush2.msra.mxu0 0.0
    %97 = vmatprep.subr.mxu0 0.0
    %98 = vmatpush2.msra.mxu0 0.0
    %99 = vmatprep.subr.mxu0 0.0
    %100 = vmatpush2.msra.mxu0 0.0
    %101 = vmatprep.subr.mxu0 0.0
    %102 = vmatpush2.msra.mxu0 0.0
    %103 = vmatprep.subr.mxu0 0.0
    %104 = vmatpush2.msra.mxu0 0.0
    %105 = vmatprep.subr.mxu0 0.0
    %106 = vmatpush2.msra.mxu0 0.0
    %107 = vmatprep.subr.mxu0 0.0
    %108 = vmatpush2.msra.mxu0 0.0
    %109 = vmatprep.subr.mxu0 0.0
    %110 = vmatpush2.msra.mxu0 0.0
    %111 = vmatprep.subr.mxu0 0.0
    %112 = vmatpush2.msra.mxu0 0.0
    %113 = vmatprep.subr.mxu0 0.0
    %114 = vmatpush2.msra.mxu0 0.0
    %115 = vmatprep.subr.mxu0 0.0
    %116 = vmatpush2.msra.mxu0 0.0
    %117 = vmatprep.subr.mxu0 0.0
    %118 = vmatpush2.msra.mxu0 0.0
    %119 = vmatprep.subr.mxu0 0.0
    %120 = vmatpush2.msra.mxu0 0.0
    %121 = vmatprep.subr.mxu0 0.0
    %122 = vmatpush2.msra.mxu0 0.0
    %123 = vmatprep.mubr.f32.mxu0 0.0
    %124 = vmatmul.mubr.f32.gmra.mxu0 %v57
    %v125 = vpop.f32.mrf.mxu0
    %v126 = vadd.f32 0.0, %v125
    %v127 = vpop.f32.mrf.mxu0
    %128 = vdwg.mxu0
    %v129 = vmul.f32 %v126, 0.2
    %v130 = vmax.f32 %v126, %v129
    %v131 = vpack.c.bf16 %v130, %v130
    %v132 = vld [vmem:[#allocation7] sm:$0xff]
    %v133 = vld [vmem:[#allocation7 + $0x8] sm:$0xff]
    %v134 = vld [vmem:[#allocation7 + $0x10] sm:$0xff]
    %v135 = vld [vmem:[#allocation7 + $0x18] sm:$0xff]
    %v136 = vld [vmem:[#allocation7 + $0x20] sm:$0xff]
    %v137 = vld [vmem:[#allocation7 + $0x28] sm:$0xff]
    %v138 = vld [vmem:[#allocation7 + $0x30] sm:$0xff]
    %v139 = vld [vmem:[#allocation7 + $0x38] sm:$0xff]
    %v140 = vld [vmem:[#allocation7 + $0x40] sm:$0xff]
    %v141 = vld [vmem:[#allocation7 + $0x48] sm:$0xff]
    %v142 = vld [vmem:[#allocation7 + $0x50] sm:$0xff]
    %v143 = vld [vmem:[#allocation7 + $0x58] sm:$0xff]
    %v144 = vld [vmem:[#allocation7 + $0x60] sm:$0xff]
    %v145 = vld [vmem:[#allocation7 + $0x68] sm:$0xff]
    %v146 = vld [vmem:[#allocation7 + $0x70] sm:$0xff]
    %v147 = vld [vmem:[#allocation7 + $0x78] sm:$0xff]
    %v148 = vld [vmem:[#allocation7 + $0x80] sm:$0xff]
    %v149 = vld [vmem:[#allocation7 + $0x88] sm:$0xff]
    %v150 = vld [vmem:[#allocation7 + $0x90] sm:$0xff]
    %v151 = vld [vmem:[#allocation7 + $0x98] sm:$0xff]
    %v152 = vld [vmem:[#allocation7 + $0xa0] sm:$0xff]
    %v153 = vld [vmem:[#allocation7 + $0xa8] sm:$0xff]
    %v154 = vld [vmem:[#allocation7 + $0xb0] sm:$0xff]
    %v155 = vld [vmem:[#allocation7 + $0xb8] sm:$0xff]
    %v156 = vld [vmem:[#allocation7 + $0xc0] sm:$0xff]
    %v157 = vld [vmem:[#allocation7 + $0xc8] sm:$0xff]
    %v158 = vld [vmem:[#allocation7 + $0xd0] sm:$0xff]
    %v159 = vld [vmem:[#allocation7 + $0xd8] sm:$0xff]
    %v160 = vld [vmem:[#allocation7 + $0xe0] sm:$0xff]
    %v161 = vld [vmem:[#allocation7 + $0xe8] sm:$0xff]
    %v162 = vld [vmem:[#allocation7 + $0xf0] sm:$0xff]
    %v163 = vld [vmem:[#allocation7 + $0xf8] sm:$0xff]
    %v196 = vunpack.c.l.b16 %v132
    %v197 = vunpack.c.h.b16 %v132
    %v198 = vunpack.c.l.b16 %v133
    %v199 = vunpack.c.h.b16 %v133
    %v200 = vunpack.c.l.b16 %v134
    %v201 = vunpack.c.h.b16 %v134
    %v202 = vunpack.c.l.b16 %v135
    %v203 = vunpack.c.h.b16 %v135
    %v204 = vunpack.c.l.b16 %v136
    %v205 = vunpack.c.h.b16 %v136
    %v206 = vunpack.c.l.b16 %v137
    %v207 = vunpack.c.h.b16 %v137
    %v208 = vunpack.c.l.b16 %v138
    %v209 = vunpack.c.h.b16 %v138
    %v210 = vunpack.c.l.b16 %v139
    %v211 = vunpack.c.h.b16 %v139
    %v212 = vunpack.c.l.b16 %v140
    %v213 = vunpack.c.h.b16 %v140
    %v214 = vunpack.c.l.b16 %v141
    %v215 = vunpack.c.h.b16 %v141
    %v216 = vunpack.c.l.b16 %v142
    %v217 = vunpack.c.h.b16 %v142
    %v218 = vunpack.c.l.b16 %v143
    %v219 = vunpack.c.h.b16 %v143
    %v220 = vunpack.c.l.b16 %v144
    %v221 = vunpack.c.h.b16 %v144
    %v222 = vunpack.c.l.b16 %v145
    %v223 = vunpack.c.h.b16 %v145
    %v224 = vunpack.c.l.b16 %v146
    %v225 = vunpack.c.h.b16 %v146
    %v226 = vunpack.c.l.b16 %v147
    %v227 = vunpack.c.h.b16 %v147
    %v228 = vunpack.c.l.b16 %v148
    %v229 = vunpack.c.h.b16 %v148
    %v230 = vunpack.c.l.b16 %v149
    %v231 = vunpack.c.h.b16 %v149
    %v232 = vunpack.c.l.b16 %v150
    %v233 = vunpack.c.h.b16 %v150
    %v234 = vunpack.c.l.b16 %v151
    %v235 = vunpack.c.h.b16 %v151
    %v236 = vunpack.c.l.b16 %v152
    %v237 = vunpack.c.h.b16 %v152
    %v238 = vunpack.c.l.b16 %v153
    %v239 = vunpack.c.h.b16 %v153
    %v240 = vunpack.c.l.b16 %v154
    %v241 = vunpack.c.h.b16 %v154
    %v242 = vunpack.c.l.b16 %v155
    %v243 = vunpack.c.h.b16 %v155
    %v244 = vunpack.c.l.b16 %v156
    %v245 = vunpack.c.h.b16 %v156
    %v246 = vunpack.c.l.b16 %v157
    %v247 = vunpack.c.h.b16 %v157
    %v248 = vunpack.c.l.b16 %v158
    %v249 = vunpack.c.h.b16 %v158
    %v250 = vunpack.c.l.b16 %v159
    %v251 = vunpack.c.h.b16 %v159
    %v252 = vunpack.c.l.b16 %v160
    %v253 = vunpack.c.h.b16 %v160
    %v254 = vunpack.c.l.b16 %v161
    %v255 = vunpack.c.h.b16 %v161
    %v256 = vunpack.c.l.b16 %v162
    %v257 = vunpack.c.h.b16 %v162
    %v258 = vunpack.c.l.b16 %v163
    %v259 = vunpack.c.h.b16 %v163
    %v260 = vpack.c.b16 %v200, %v196
    %v261 = vpack.c.b16 %v201, %v197
    %v262 = vpack.c.b16 %v202, %v198
    %v263 = vpack.c.b16 %v203, %v199
    %v264 = vpack.c.b16 %v208, %v204
    %v265 = vpack.c.b16 %v209, %v205
    %v266 = vpack.c.b16 %v210, %v206
    %v267 = vpack.c.b16 %v211, %v207
    %v268 = vpack.c.b16 %v216, %v212
    %v269 = vpack.c.b16 %v217, %v213
    %v270 = vpack.c.b16 %v218, %v214
    %v271 = vpack.c.b16 %v219, %v215
    %v272 = vpack.c.b16 %v224, %v220
    %v273 = vpack.c.b16 %v225, %v221
    %v274 = vpack.c.b16 %v226, %v222
    %v275 = vpack.c.b16 %v227, %v223
    %v276 = vpack.c.b16 %v232, %v228
    %v277 = vpack.c.b16 %v233, %v229
    %v278 = vpack.c.b16 %v234, %v230
    %v279 = vpack.c.b16 %v235, %v231
    %v280 = vpack.c.b16 %v240, %v236
    %v281 = vpack.c.b16 %v241, %v237
    %v282 = vpack.c.b16 %v242, %v238
    %v283 = vpack.c.b16 %v243, %v239
    %v284 = vpack.c.b16 %v248, %v244
    %v285 = vpack.c.b16 %v249, %v245
    %v286 = vpack.c.b16 %v250, %v246
    %v287 = vpack.c.b16 %v251, %v247
    %v288 = vpack.c.b16 %v256, %v252
    %v289 = vpack.c.b16 %v257, %v253
    %v290 = vpack.c.b16 %v258, %v254
    %v291 = vpack.c.b16 %v259, %v255
    %324 = vmatprep.subr.bf16.mxu0 %v289
    %325 = vmatpush1.bf16.msra.mxu0 %v288
    %326 = vmatprep.subr.bf16.mxu0 %v285
    %327 = vmatpush1.bf16.msra.mxu0 %v284
    %328 = vmatprep.subr.bf16.mxu0 %v281
    %329 = vmatpush1.bf16.msra.mxu0 %v280
    %330 = vmatprep.subr.bf16.mxu0 %v277
    %331 = vmatpush1.bf16.msra.mxu0 %v276
    %332 = vmatprep.subr.bf16.mxu0 %v273
    %333 = vmatpush1.bf16.msra.mxu0 %v272
    %334 = vmatprep.subr.bf16.mxu0 %v269
    %335 = vmatpush1.bf16.msra.mxu0 %v268
    %336 = vmatprep.subr.bf16.mxu0 %v265
    %337 = vmatpush1.bf16.msra.mxu0 %v264
    %338 = vmatprep.subr.bf16.mxu0 %v261
    %339 = vmatpush1.bf16.msra.mxu0 %v260
    %340 = vmatprep.subr.bf16.mxu0 0
    %341 = vmatpush2.bf16.msra.mxu0 0
    %342 = vmatprep.subr.bf16.mxu0 0
    %343 = vmatpush2.bf16.msra.mxu0 0
    %344 = vmatprep.subr.bf16.mxu0 0
    %345 = vmatpush2.bf16.msra.mxu0 0
    %346 = vmatprep.subr.bf16.mxu0 0
    %347 = vmatpush2.bf16.msra.mxu0 0
    %348 = vmatprep.subr.bf16.mxu0 0
    %349 = vmatpush2.bf16.msra.mxu0 0
    %350 = vmatprep.subr.bf16.mxu0 0
    %351 = vmatpush2.bf16.msra.mxu0 0
    %352 = vmatprep.subr.bf16.mxu0 0
    %353 = vmatpush2.bf16.msra.mxu0 0
    %354 = vmatprep.subr.bf16.mxu0 0
    %355 = vmatpush2.bf16.msra.mxu0 0
    %356 = vmatprep.mubr.bf16.mxu0 0
    %357 = vmatmul.mubr.bf16.gmra.mxu0 %v131
    %v358 = vpop.f32.mrf.mxu0
    %v359 = vadd.f32 0.0, %v358
    %v360 = vpop.f32.mrf.mxu0
    %v361 = vadd.f32 0.0, %v360
    %v362 = vpop.f32.mrf.mxu0
    %v363 = vpop.f32.mrf.mxu0
    %364 = vdwg.mxu0
    %365 = vmatprep.subr.bf16.mxu0 %v291
    %366 = vmatpush1.bf16.msra.mxu0 %v290
    %367 = vmatprep.subr.bf16.mxu0 %v287
    %368 = vmatpush1.bf16.msra.mxu0 %v286
    %369 = vmatprep.subr.bf16.mxu0 %v283
    %370 = vmatpush1.bf16.msra.mxu0 %v282
    %371 = vmatprep.subr.bf16.mxu0 %v279
    %372 = vmatpush1.bf16.msra.mxu0 %v278
    %373 = vmatprep.subr.bf16.mxu0 %v275
    %374 = vmatpush1.bf16.msra.mxu0 %v274
    %375 = vmatprep.subr.bf16.mxu0 %v271
    %376 = vmatpush1.bf16.msra.mxu0 %v270
    %377 = vmatprep.subr.bf16.mxu0 %v267
    %378 = vmatpush1.bf16.msra.mxu0 %v266
    %379 = vmatprep.subr.bf16.mxu0 %v263
    %380 = vmatpush1.bf16.msra.mxu0 %v262
    %381 = vmatprep.subr.bf16.mxu0 0
    %382 = vmatpush2.bf16.msra.mxu0 0
    %383 = vmatprep.subr.bf16.mxu0 0
    %384 = vmatpush2.bf16.msra.mxu0 0
    %385 = vmatprep.subr.bf16.mxu0 0
    %386 = vmatpush2.bf16.msra.mxu0 0
    %387 = vmatprep.subr.bf16.mxu0 0
    %388 = vmatpush2.bf16.msra.mxu0 0
    %389 = vmatprep.subr.bf16.mxu0 0
    %390 = vmatpush2.bf16.msra.mxu0 0
    %391 = vmatprep.subr.bf16.mxu0 0
    %392 = vmatpush2.bf16.msra.mxu0 0
    %393 = vmatprep.subr.bf16.mxu0 0
    %394 = vmatpush2.bf16.msra.mxu0 0
    %395 = vmatprep.subr.bf16.mxu0 0
    %396 = vmatpush2.bf16.msra.mxu0 0
    %397 = vmatprep.mubr.bf16.mxu0 0
    %398 = vmatmul.mubr.bf16.gmra.mxu0 %v131
    %v399 = vpop.f32.mrf.mxu0
    %v400 = vadd.f32 0.0, %v399
    %v401 = vpop.f32.mrf.mxu0
    %v402 = vadd.f32 0.0, %v401
    %v403 = vpop.f32.mrf.mxu0
    %v404 = vpop.f32.mrf.mxu0
    %405 = vdwg.mxu0
    %v406 = vtanh.pop %v359
    %v407 = vtanh.pop %v361
    %v408 = vtanh.pop %v400
    %v409 = vtanh.pop %v402
    %410 = vst [vmem:[#allocation8] sm:$0xff] %v406
    %411 = vst [vmem:[#allocation8 + $0x8] sm:$0xff] %v407
    %412 = vst [vmem:[#allocation8 + $0x10] sm:$0xff] %v408
    %413 = vst [vmem:[#allocation8 + $0x18] sm:$0xff] %v409
    // Predicated region
    $region26: #{tpu_custom_call.1} parent=1 // pred_check
      _
    $region27: #{tpu_custom_call.1} parent=1 // pred_check_branch
      %415 = sbr.rel (0) target = $region29
    $region28: #{tpu_custom_call.1} parent=1 // pred_region
      %s417 = ssub.s32 512, 512
      %418 = vsyncadd [#allocation4], %s417
      %s420 = sshll.u32 [#allocation8], 4
      %s421 = int_to_ptr.vmem [resolvable:$true] %s420
      %423 = dma.vmem_to_hbm [thread:$0]  %s421, 512, %s3, [#allocation4]
    $region29: #{tpu_custom_call.1} parent=1 // pred_fallthru
      _
    // Predicated region
    $region30: #{tpu_custom_call.1} parent=1 // pred_check
      _
    $region31: #{tpu_custom_call.1} parent=1 // pred_check_branch
      %425 = sbr.rel (0) target = $region33
    $region32: #{tpu_custom_call.1} parent=1 // pred_region
      %426 = dma.done [#allocation4], 512
    $region33: #{tpu_custom_call.1} parent=1 // pred_fallthru
      _
    %427 = vsyncpa [#allocation3], 1
    %428 = vsyncpa [#allocation6], 1
    %429 = vsyncpa [#allocation4], 1

</llo_original>
